<compile_context>
chip_gen: v6e
topology: v6e:2x2x1
jax: 0.10.0
libtpu: 0.0.40
codegen_flags: <defaults>
</compile_context>

<pallas_src>
import functools

import jax
import jax.numpy as jnp
from jax.experimental import pallas as pl
from jax.experimental.pallas import tpu as pltpu


def _round_up(x, m):
    return (x + m - 1) // m * m


def _itemsize(dt):
    return jnp.dtype(dt).itemsize


def _cpl_matmul_kernel(x_ref, w_ref, *rest, add_bias):
    # x_ref: (tm, tk)   w_ref: (tk, tn)   [b_ref: (1, tn)]
    # o_ref: (tm, tn)   acc_ref: (tm, tn) fp32
    if add_bias:
        b_ref, o_ref, acc_ref = rest
    else:
        o_ref, acc_ref = rest
        b_ref = None

    k = pl.program_id(2)

    # Native [M,K] x [K,N] contraction — weight already in (K, N) layout.
    prod = jnp.dot(x_ref[...], w_ref[...], preferred_element_type=jnp.float32)

    @pl.when(k == 0)
    def _():
        # First K step: write directly (no zero-init + read-modify-write).
        acc_ref[...] = prod

    @pl.when(k > 0)
    def _():
        acc_ref[...] += prod

    @pl.when(k == pl.num_programs(2) - 1)
    def _():
        out = acc_ref[...]
        if add_bias:
            out = out + b_ref[...].astype(jnp.float32)
        o_ref[...] = out.astype(o_ref.dtype)


class ColumnParallelLinearPallas:
    """Pallas forward for ColumnParallelLinear (TP world size == 1).

    weight : (output_size_per_partition, input_size)
    bias   : (output_size_per_partition,) or None
    Call with x of shape (..., input_size), e.g. [sequence, batch, hidden];
    returns (..., output_size_per_partition).

    The weight transpose to (K, N) and its padding to tile-aligned shapes are
    done once here, not per forward call.
    """

    def __init__(self, weight, bias=None, *, tm=512, tn=512, tk=1024):
        self.n_out, self.k_dim = weight.shape
        self.tm = tm
        # Clamp tiles to the (lane/sublane aligned) problem size.
        self.tn = min(tn, _round_up(self.n_out, 128))
        self.tk = min(tk, _round_up(self.k_dim, 128))
        self.n_pad = _round_up(self.n_out, self.tn)
        self.k_pad = _round_up(self.k_dim, self.tk)

        # Hoisted: transpose weight to (K, N) and pad once.
        w_kn = weight.T
        if w_kn.shape != (self.k_pad, self.n_pad):
            w_kn = jnp.pad(w_kn, ((0, self.k_pad - self.k_dim),
                                  (0, self.n_pad - self.n_out)))
        self.w_kn = w_kn

        if bias is not None:
            b = bias.reshape(1, self.n_out)
            if self.n_pad != self.n_out:
                b = jnp.pad(b, ((0, 0), (0, self.n_pad - self.n_out)))
            self.bias = b
        else:
            self.bias = None

    def __call__(self, x):
        orig_lead = x.shape[:-1]
        assert x.shape[-1] == self.k_dim, \
            "input hidden dim must match weight input_size"
        m = 1
        for d in orig_lead:
            m *= d

        out_dtype = jnp.result_type(x.dtype, self.w_kn.dtype)

        tm = min(self.tm, _round_up(max(m, 1), 8))
        m_pad = _round_up(max(m, 1), tm)

        x2 = x.reshape(m, self.k_dim)
        if (m_pad, self.k_pad) != x2.shape:
            x2 = jnp.pad(x2, ((0, m_pad - m), (0, self.k_pad - self.k_dim)))

        # Megacore: if the whole M x N grid is a single block, split N so both
        # TensorCores (v7x) get a parallel block to work on.
        tn = self.tn
        if (m_pad // tm) == 1 and (self.n_pad // tn) == 1 and self.n_pad >= 256:
            half = self.n_pad // 2
            if half % 128 == 0:
                tn = half
        tk = self.tk

        grid = (m_pad // tm, self.n_pad // tn, self.k_pad // tk)

        add_bias = self.bias is not None
        in_specs = [
            pl.BlockSpec((tm, tk), lambda i, j, k: (i, k)),   # X tile (M, K)
            pl.BlockSpec((tk, tn), lambda i, j, k: (k, j)),   # W tile (K, N)
        ]
        args = [x2, self.w_kn]
        if add_bias:
            in_specs.append(pl.BlockSpec((1, tn), lambda i, j, k: (0, j)))
            args.append(self.bias)

        # VMEM budget: double-buffered input/output tiles + fp32 accumulator,
        # plus a little headroom. Stays far below v7x's 64 MiB with defaults.
        footprint = (2 * tm * tk * _itemsize(x2.dtype)
                     + 2 * tk * tn * _itemsize(self.w_kn.dtype)
                     + 2 * tm * tn * _itemsize(out_dtype)
                     + tm * tn * 4)
        if add_bias:
            footprint += 2 * 8 * tn * _itemsize(self.bias.dtype)
        vmem_limit = int(max(32 << 20, footprint + (4 << 20)))

        kernel = functools.partial(_cpl_matmul_kernel, add_bias=add_bias)

        out = pl.pallas_call(
            kernel,
            out_shape=jax.ShapeDtypeStruct((m_pad, self.n_pad), out_dtype),
            grid_spec=pltpu.PrefetchScalarGridSpec(
                num_scalar_prefetch=0,
                grid=grid,
                in_specs=in_specs,
                out_specs=pl.BlockSpec((tm, tn), lambda i, j, k: (i, j)),
                scratch_shapes=[pltpu.VMEM((tm, tn), jnp.float32)],
            ),
            compiler_params=pltpu.CompilerParams(
                dimension_semantics=("parallel", "parallel", "arbitrary"),
                vmem_limit_bytes=vmem_limit),
        )(*args)

        if m_pad != m or self.n_pad != self.n_out:
            out = out[:m, :self.n_out]
        out = out.reshape(*orig_lead, self.n_out)
        # TODO(synk): copy_to_tensor_model_parallel_region (fwd identity) and
        # gather_from_tensor_model_parallel_region (gather_output=True) are TP
        # collectives; identity here since tensor_parallel_world_size == 1.
        # TODO(synk): sequence_parallel all-gather of the input not implemented.
        return out


if __name__ == "__main__":
    # Small, deterministic shapes consistent with the module's forward:
    # input is [sequence, batch, hidden] = (8, 2, 32), output_size = 64 (TP=1).
    seq, batch, hidden = 8, 2, 32
    output_size = 64

    key = jax.random.PRNGKey(0)
    k_x, k_w, k_b = jax.random.split(key, 3)

    # xavier_normal_: std = sqrt(2 / (fan_in + fan_out))
    std = (2.0 / (hidden + output_size)) ** 0.5
    weight = jax.random.normal(k_w, (output_size, hidden),
                               dtype=jnp.float32) * std
    # Module initializes bias to zero; non-zero bias exercises the add path.
    bias = jax.random.normal(k_b, (output_size,), dtype=jnp.float32) * 0.1

    x = jax.random.normal(k_x, (seq, batch, hidden), dtype=jnp.float32)

    # With bias.
    layer = ColumnParallelLinearPallas(weight, bias)
    out = jax.block_until_ready(layer(x))

    ref = jnp.einsum("sbh,oh->sbo", x, weight) + bias
    assert out.shape == (seq, batch, output_size)
    assert out.dtype == x.dtype
    assert jnp.allclose(out, ref, atol=1e-4, rtol=1e-4)

    # Without bias (operand dropped entirely from the kernel).
    layer_nb = ColumnParallelLinearPallas(weight, None)
    out_nb = jax.block_until_ready(layer_nb(x))
    ref_nb = jnp.einsum("sbh,oh->sbo", x, weight)
    assert jnp.allclose(out_nb, ref_nb, atol=1e-4, rtol=1e-4)

    print("KERNEL_OK")
</pallas_src>

<mosaic_0001>
module attributes {stable_mosaic.version = 11 : i64} {
  func.func @_cpl_matmul_kernel(%arg0: i32, %arg1: i32, %arg2: i32, %arg3: memref<16x128xf32, #tpu.memory_space<vmem>>, %arg4: memref<128x128xf32, #tpu.memory_space<vmem>>, %arg5: memref<1x128xf32, #tpu.memory_space<vmem>>, %arg6: memref<16x128xf32, #tpu.memory_space<vmem>>, %arg7: memref<16x128xf32, #tpu.memory_space<vmem>>) attributes {dimension_semantics = [#tpu.dimension_semantics<parallel>, #tpu.dimension_semantics<parallel>, #tpu.dimension_semantics<arbitrary>], iteration_bounds = array<i64: 1, 1, 1>, scalar_prefetch = 0 : i64, scratch_operands = 1 : i64, tpu.core_type = #tpu.core_type<tc>, window_params = [{transform_indices = @transform_0, window_bounds = array<i64: 16, 128>}, {transform_indices = @transform_1, window_bounds = array<i64: 128, 128>}, {transform_indices = @transform_2, window_bounds = array<i64: 1, 128>}, {transform_indices = @transform_3, window_bounds = array<i64: 16, 128>}]} {
    %c0 = arith.constant 0 : index
    %c0_0 = arith.constant 0 : index
    %0 = vector.load %arg3[%c0, %c0_0] : memref<16x128xf32, #tpu.memory_space<vmem>>, vector<16x128xf32>
    %c0_1 = arith.constant 0 : index
    %c0_2 = arith.constant 0 : index
    %1 = vector.load %arg4[%c0_1, %c0_2] : memref<128x128xf32, #tpu.memory_space<vmem>>, vector<128x128xf32>
    %cst = arith.constant dense<0.000000e+00> : vector<16x128xf32>
    %2 = tpu.matmul %0, %1, %cst {dimension_numbers = #tpu.dot_dimension_numbers<[1], [0], [0], [1], [0, 0, 1, 1], [], []>} : vector<16x128xf32>, vector<128x128xf32>, vector<16x128xf32> -> vector<16x128xf32>
    %c0_i32 = arith.constant 0 : i32
    %3 = arith.cmpi eq, %arg2, %c0_i32 : i32
    %4 = arith.extui %3 : i1 to i32
    %c0_i32_3 = arith.constant 0 : i32
    %5 = arith.cmpi ne, %4, %c0_i32_3 : i32
    scf.if %5 {
      %c0_8 = arith.constant 0 : index
      %c0_9 = arith.constant 0 : index
      %12 = vector.load %arg7[%c0_8, %c0_9] : memref<16x128xf32, #tpu.memory_space<vmem>>, vector<16x128xf32>
      tpu.vector_store %arg7[%c0_8, %c0_9], %2 {strides = array<i32>} : memref<16x128xf32, #tpu.memory_space<vmem>>, vector<16x128xf32>,
    } else {
    }
    %c0_i32_4 = arith.constant 0 : i32
    %6 = arith.cmpi sgt, %arg2, %c0_i32_4 : i32
    %7 = arith.extui %6 : i1 to i32
    %c0_i32_5 = arith.constant 0 : i32
    %8 = arith.cmpi ne, %7, %c0_i32_5 : i32
    scf.if %8 {
      %c0_8 = arith.constant 0 : index
      %c0_9 = arith.constant 0 : index
      %12 = vector.load %arg7[%c0_8, %c0_9] : memref<16x128xf32, #tpu.memory_space<vmem>>, vector<16x128xf32>
      %13 = arith.addf %12, %2 : vector<16x128xf32>
      %c0_10 = arith.constant 0 : index
      %c0_11 = arith.constant 0 : index
      %14 = vector.load %arg7[%c0_10, %c0_11] : memref<16x128xf32, #tpu.memory_space<vmem>>, vector<16x128xf32>
      tpu.vector_store %arg7[%c0_10, %c0_11], %13 {strides = array<i32>} : memref<16x128xf32, #tpu.memory_space<vmem>>, vector<16x128xf32>,
    } else {
    }
    %c0_i32_6 = arith.constant 0 : i32
    %9 = arith.cmpi eq, %arg2, %c0_i32_6 : i32
    %10 = arith.extui %9 : i1 to i32
    %c0_i32_7 = arith.constant 0 : i32
    %11 = arith.cmpi ne, %10, %c0_i32_7 : i32
    scf.if %11 {
      %c0_8 = arith.constant 0 : index
      %c0_9 = arith.constant 0 : index
      %12 = vector.load %arg7[%c0_8, %c0_9] : memref<16x128xf32, #tpu.memory_space<vmem>>, vector<16x128xf32>
      %c0_10 = arith.constant 0 : index
      %c0_11 = arith.constant 0 : index
      %13 = vector.load %arg5[%c0_10, %c0_11] : memref<1x128xf32, #tpu.memory_space<vmem>>, vector<1x128xf32>
      %14 = vector.broadcast %13 : vector<1x128xf32> to vector<16x128xf32>
      %15 = arith.addf %12, %14 : vector<16x128xf32>
      %c0_12 = arith.constant 0 : index
      %c0_13 = arith.constant 0 : index
      %16 = vector.load %arg6[%c0_12, %c0_13] : memref<16x128xf32, #tpu.memory_space<vmem>>, vector<16x128xf32>
      tpu.vector_store %arg6[%c0_12, %c0_13], %15 {strides = array<i32>} : memref<16x128xf32, #tpu.memory_space<vmem>>, vector<16x128xf32>,
    } else {
    }
    return
  }
  func.func @transform_0(%arg0: i32, %arg1: i32, %arg2: i32) -> (i32, i32) {
    %c0_i32 = arith.constant 0 : i32
    return %arg0, %arg2 : i32, i32
  }
  func.func @transform_1(%arg0: i32, %arg1: i32, %arg2: i32) -> (i32, i32) {
    %c0_i32 = arith.constant 0 : i32
    return %arg2, %arg1 : i32, i32
  }
  func.func @transform_2(%arg0: i32, %arg1: i32, %arg2: i32) -> (i32, i32) {
    %c0_i32 = arith.constant 0 : i32
    %c0_i32_0 = arith.constant 0 : i32
    return %c0_i32, %arg1 : i32, i32
  }
  func.func @transform_3(%arg0: i32, %arg1: i32, %arg2: i32) -> (i32, i32) {
    %c0_i32 = arith.constant 0 : i32
    return %arg0, %arg1 : i32, i32
  }
}

</mosaic_0001>

<llo_original>
// kernel: tpu_custom_call.1
$region0: #{tpu_custom_call.1}
  #allocation0 [shape = 'u32[]', space=smem, size = 0x4, offset = 0x4, fixed_abs, tag = 'smem constant byte address 0x4 - core index']
  #allocation1 [shape = 'u32[144,128]{1,0:T(1,128)}', space=vmem, size = 0x12000, scoped, tag = 'internal scratch']
  #allocation2 [shape = 'f32[16,128]{1,0:T(8,128)}', space=vmem, size = 0x2000, scoped, tag = 'scratch operand']
  %s0 = inlined_call_operand.hbm [shape: f32[16,128], index: 0, kind: input, shape index: {}]
  %s1 = inlined_call_operand.hbm [shape: f32[128,128], index: 1, kind: input, shape index: {}]
  %s2 = inlined_call_operand.vmem [shape: f32[1,128], index: 2, kind: input, shape index: {}]
  %s3 = inlined_call_operand.hbm [shape: f32[16,128], index: 3, kind: output, shape index: {}]
  %s4 = sld [smem:[#allocation0]]
  $region42: #{tpu_custom_call.1} parent=0
    _
  %s6 = ssub.s32 1, %s4
  %s7 = scalar_select 0, %s6, %s4
  $region1: #{tpu_custom_call.1} parent=0
    #allocation3 [shape = 'u8[8192]{0}', space=vmem, size = 0x2000, scoped, tag = 'input window, operand 0, single buffered']
    #allocation4 [shape = 's32[1]{0}', space=sflag, size = 0x4, scoped, tag = 'scoped memory for tpu_custom_call.1']
    #allocation5 [shape = 's32[1]{0}', space=sflag, size = 0x4, scoped, tag = 'scoped memory for tpu_custom_call.1']
    #allocation6 [shape = 'u8[65536]{0}', space=vmem, size = 0x10000, scoped, tag = 'input window, operand 1, single buffered']
    #allocation7 [shape = 's32[1]{0}', space=sflag, size = 0x4, scoped, tag = 'scoped memory for tpu_custom_call.1']
    #allocation8 [shape = 'u8[8192]{0}', space=vmem, size = 0x2000, scoped, tag = 'output window, operand 0, single buffered']
    %8 = vsyncpa [#allocation4], 0
    %9 = vsyncpa [#allocation7], 0
    %10 = vsyncpa [#allocation5], 0
    // Predicated region
    $region2: #{tpu_custom_call.1} parent=1 // pred_check
      _
    $region3: #{tpu_custom_call.1} parent=1 // pred_check_branch
      %12 = sbr.rel (0) target = $region5
    $region4: #{tpu_custom_call.1} parent=1 // pred_region
      %s14 = ssub.s32 256, 256
      %15 = vsyncadd [#allocation4], %s14
      %s16 = sshll.u32 [#allocation3], 4
      %s17 = int_to_ptr.vmem [resolvable:$true] %s16
      %22 = dma.hbm_to_vmem [thread:$0]  %s0, 256, %s17, [#allocation4], 128, 128, 8
    $region5: #{tpu_custom_call.1} parent=1 // pred_fallthru
      _
    // Predicated region
    $region6: #{tpu_custom_call.1} parent=1 // pred_check
      _
    $region7: #{tpu_custom_call.1} parent=1 // pred_check_branch
      %24 = sbr.rel (0) target = $region9
    $region8: #{tpu_custom_call.1} parent=1 // pred_region
      %s26 = ssub.s32 2048, 2048
      %27 = vsyncadd [#allocation7], %s26
      %s28 = sshll.u32 [#allocation6], 4
      %s29 = int_to_ptr.vmem [resolvable:$true] %s28
      %34 = dma.hbm_to_vmem [thread:$0]  %s1, 2048, %s29, [#allocation7], 128, 128, 8
    $region9: #{tpu_custom_call.1} parent=1 // pred_fallthru
      _
    // Predicated region
    $region10: #{tpu_custom_call.1} parent=1 // pred_check
      _
    $region11: #{tpu_custom_call.1} parent=1 // pred_check_branch
      %36 = sbr.rel (0) target = $region13
    $region12: #{tpu_custom_call.1} parent=1 // pred_region
      _
    $region13: #{tpu_custom_call.1} parent=1 // pred_fallthru
      _
    // Predicated region
    $region14: #{tpu_custom_call.1} parent=1 // pred_check
      _
    $region15: #{tpu_custom_call.1} parent=1 // pred_check_branch
      %38 = sbr.rel (0) target = $region17
    $region16: #{tpu_custom_call.1} parent=1 // pred_region
      %39 = dma.done [#allocation4], 256
    $region17: #{tpu_custom_call.1} parent=1 // pred_fallthru
      _
    // Predicated region
    $region18: #{tpu_custom_call.1} parent=1 // pred_check
      _
    $region19: #{tpu_custom_call.1} parent=1 // pred_check_branch
      %41 = sbr.rel (0) target = $region21
    $region20: #{tpu_custom_call.1} parent=1 // pred_region
      %42 = dma.done [#allocation7], 2048
    $region21: #{tpu_custom_call.1} parent=1 // pred_fallthru
      _
    %v43 = vld [vmem:[#allocation3] sm:$0xff]
    %v44 = vld [vmem:[#allocation3 + $0x8] sm:$0xff]
    %v45 = vld [vmem:[#allocation6] sm:$0xff]
    %v46 = vld [vmem:[#allocation6 + $0x8] sm:$0xff]
    %v47 = vld [vmem:[#allocation6 + $0x10] sm:$0xff]
    %v48 = vld [vmem:[#allocation6 + $0x18] sm:$0xff]
    %v49 = vld [vmem:[#allocation6 + $0x20] sm:$0xff]
    %v50 = vld [vmem:[#allocation6 + $0x28] sm:$0xff]
    %v51 = vld [vmem:[#allocation6 + $0x30] sm:$0xff]
    %v52 = vld [vmem:[#allocation6 + $0x38] sm:$0xff]
    %v53 = vld [vmem:[#allocation6 + $0x40] sm:$0xff]
    %v54 = vld [vmem:[#allocation6 + $0x48] sm:$0xff]
    %v55 = vld [vmem:[#allocation6 + $0x50] sm:$0xff]
    %v56 = vld [vmem:[#allocation6 + $0x58] sm:$0xff]
    %v57 = vld [vmem:[#allocation6 + $0x60] sm:$0xff]
    %v58 = vld [vmem:[#allocation6 + $0x68] sm:$0xff]
    %v59 = vld [vmem:[#allocation6 + $0x70] sm:$0xff]
    %v60 = vld [vmem:[#allocation6 + $0x78] sm:$0xff]
    %61 = vmatprep.subr.mxu0 0.0
    %62 = vmatpush1.msra.mxu0 %v60
    %63 = vmatprep.subr.mxu0 0.0
    %64 = vmatpush1.msra.mxu0 %v59
    %65 = vmatprep.subr.mxu0 0.0
    %66 = vmatpush1.msra.mxu0 %v58
    %67 = vmatprep.subr.mxu0 0.0
    %68 = vmatpush1.msra.mxu0 %v57
    %69 = vmatprep.subr.mxu0 0.0
    %70 = vmatpush1.msra.mxu0 %v56
    %71 = vmatprep.subr.mxu0 0.0
    %72 = vmatpush1.msra.mxu0 %v55
    %73 = vmatprep.subr.mxu0 0.0
    %74 = vmatpush1.msra.mxu0 %v54
    %75 = vmatprep.subr.mxu0 0.0
    %76 = vmatpush1.msra.mxu0 %v53
    %77 = vmatprep.subr.mxu0 0.0
    %78 = vmatpush1.msra.mxu0 %v52
    %79 = vmatprep.subr.mxu0 0.0
    %80 = vmatpush1.msra.mxu0 %v51
    %81 = vmatprep.subr.mxu0 0.0
    %82 = vmatpush1.msra.mxu0 %v50
    %83 = vmatprep.subr.mxu0 0.0
    %84 = vmatpush1.msra.mxu0 %v49
    %85 = vmatprep.subr.mxu0 0.0
    %86 = vmatpush1.msra.mxu0 %v48
    %87 = vmatprep.subr.mxu0 0.0
    %88 = vmatpush1.msra.mxu0 %v47
    %89 = vmatprep.subr.mxu0 0.0
    %90 = vmatpush1.msra.mxu0 %v46
    %91 = vmatprep.subr.mxu0 0.0
    %92 = vmatpush1.msra.mxu0 %v45
    %93 = vmatprep.subr.mxu0 0.0
    %94 = vmatpush2.msra.mxu0 0.0
    %95 = vmatprep.subr.mxu0 0.0
    %96 = vmatpush2.msra.mxu0 0.0
    %97 = vmatprep.subr.mxu0 0.0
    %98 = vmatpush2.msra.mxu0 0.0
    %99 = vmatprep.subr.mxu0 0.0
    %100 = vmatpush2.msra.mxu0 0.0
    %101 = vmatprep.subr.mxu0 0.0
    %102 = vmatpush2.msra.mxu0 0.0
    %103 = vmatprep.subr.mxu0 0.0
    %104 = vmatpush2.msra.mxu0 0.0
    %105 = vmatprep.subr.mxu0 0.0
    %106 = vmatpush2.msra.mxu0 0.0
    %107 = vmatprep.subr.mxu0 0.0
    %108 = vmatpush2.msra.mxu0 0.0
    %109 = vmatprep.subr.mxu0 0.0
    %110 = vmatpush2.msra.mxu0 0.0
    %111 = vmatprep.subr.mxu0 0.0
    %112 = vmatpush2.msra.mxu0 0.0
    %113 = vmatprep.subr.mxu0 0.0
    %114 = vmatpush2.msra.mxu0 0.0
    %115 = vmatprep.subr.mxu0 0.0
    %116 = vmatpush2.msra.mxu0 0.0
    %117 = vmatprep.subr.mxu0 0.0
    %118 = vmatpush2.msra.mxu0 0.0
    %119 = vmatprep.subr.mxu0 0.0
    %120 = vmatpush2.msra.mxu0 0.0
    %121 = vmatprep.subr.mxu0 0.0
    %122 = vmatpush2.msra.mxu0 0.0
    %123 = vmatprep.subr.mxu0 0.0
    %124 = vmatpush2.msra.mxu0 0.0
    %125 = vmatprep.mubr.f32.mxu0 0.0
    %126 = vmatmul.mubr.f32.gmra.mxu0 %v43
    %v127 = vpop.f32.mrf.mxu0
    %v128 = vadd.f32 0.0, %v127
    %v129 = vpop.f32.mrf.mxu0
    %130 = vmatprep.mubr.f32.mxu0 0.0
    %131 = vmatmul.mubr.f32.gmra.mxu0 %v44
    %v132 = vpop.f32.mrf.mxu0
    %v133 = vadd.f32 0.0, %v132
    %v134 = vpop.f32.mrf.mxu0
    %135 = vdwg.mxu0
    %p136 = scmp.eq.s32.totalorder 0, 0
    // Predicated region
    $region22: #{tpu_custom_call.1} parent=1 // pred_check
      %p137 = pneg %p136
    $region23: #{tpu_custom_call.1} parent=1 // pred_check_branch
      %139 = sbr.rel (%p137) target = $region25
    $region24: #{tpu_custom_call.1} parent=1 // pred_region
      %140 = vst [vmem:[#allocation2] sm:$0xff] %v128
      %141 = vst [vmem:[#allocation2 + $0x8] sm:$0xff] %v133
    $region25: #{tpu_custom_call.1} parent=1 // pred_fallthru
      _
    %p142 = scmp.gt.s32.totalorder 0, 0
    // Predicated region
    $region26: #{tpu_custom_call.1} parent=1 // pred_check
      %p143 = pneg %p142
    $region27: #{tpu_custom_call.1} parent=1 // pred_check_branch
      %145 = sbr.rel (%p143) target = $region29
    $region28: #{tpu_custom_call.1} parent=1 // pred_region
      %v146 = vld [vmem:[#allocation2] sm:$0xff]
      %v147 = vld [vmem:[#allocation2 + $0x8] sm:$0xff]
      %v148 = vadd.f32 %v146, %v128
      %v149 = vadd.f32 %v147, %v133
      %150 = vst [vmem:[#allocation2] sm:$0xff] %v148
      %151 = vst [vmem:[#allocation2 + $0x8] sm:$0xff] %v149
    $region29: #{tpu_custom_call.1} parent=1 // pred_fallthru
      _
    // Predicated region
    $region30: #{tpu_custom_call.1} parent=1 // pred_check
      %p152 = pneg %p136
    $region31: #{tpu_custom_call.1} parent=1 // pred_check_branch
      %154 = sbr.rel (%p152) target = $region33
    $region32: #{tpu_custom_call.1} parent=1 // pred_region
      %v155 = vld [vmem:[#allocation2] sm:$0xff]
      %v156 = vld [vmem:[#allocation2 + $0x8] sm:$0xff]
      %v157 = vld [vmem:[%s2] sm:$0x1]
      %v159 = vlaneseq
      %v160 = vshrl.u32 %v159, 7
      %v161 = vsub.s32 0, %v160
      %v162 = vrot.slane %v157, %v161
      %v164 = vadd.f32 %v155, %v162
      %v165 = vadd.f32 %v156, %v162
      %166 = vst [vmem:[#allocation8] sm:$0xff] %v164
      %167 = vst [vmem:[#allocation8 + $0x8] sm:$0xff] %v165
    $region33: #{tpu_custom_call.1} parent=1 // pred_fallthru
      _
    // Predicated region
    $region34: #{tpu_custom_call.1} parent=1 // pred_check
      _
    $region35: #{tpu_custom_call.1} parent=1 // pred_check_branch
      %169 = sbr.rel (0) target = $region37
    $region36: #{tpu_custom_call.1} parent=1 // pred_region
      %s171 = ssub.s32 256, 256
      %172 = vsyncadd [#allocation5], %s171
      %s173 = sshll.u32 [#allocation8], 4
      %s174 = int_to_ptr.vmem [resolvable:$true] %s173
      %179 = dma.vmem_to_hbm [thread:$0]  %s174, 256, %s3, [#allocation5], 128, 128, 8
    $region37: #{tpu_custom_call.1} parent=1 // pred_fallthru
      _
    // Predicated region
    $region38: #{tpu_custom_call.1} parent=1 // pred_check
      _
    $region39: #{tpu_custom_call.1} parent=1 // pred_check_branch
      %181 = sbr.rel (0) target = $region41
    $region40: #{tpu_custom_call.1} parent=1 // pred_region
      %182 = dma.done [#allocation5], 256
    $region41: #{tpu_custom_call.1} parent=1 // pred_fallthru
      _
    %183 = vsyncpa [#allocation4], 1
    %184 = vsyncpa [#allocation7], 1
    %185 = vsyncpa [#allocation5], 1

</llo_original>
